<compile_context>
chip_gen: v5e
topology: v5e:2x2
jax: 0.10.0
libtpu: 0.0.40
codegen_flags: <defaults>
</compile_context>

<pallas_src>
import functools

import jax
import jax.numpy as jnp
from jax.experimental import pallas as pl
from jax.experimental.pallas import tpu as pltpu


def _round_up(x: int, m: int) -> int:
    return (x + m - 1) // m * m


def _linear_kernel(x_ref, w_ref, b_ref, o_ref, acc_ref):
    """One (tm, tn) output tile, accumulated over the K grid axis.

    x_ref: [tm, tk] bf16, w_ref: [tk, tn] bf16, b_ref: [1, tn] f32,
    o_ref: [tm, tn] f32, acc_ref: [tm, tn] f32 scratch.
    """
    k = pl.program_id(2)

    @pl.when(k == 0)
    def _():
        acc_ref[...] = jnp.zeros_like(acc_ref)

    acc_ref[...] += jnp.dot(x_ref[...], w_ref[...],
                            preferred_element_type=jnp.float32)

    @pl.when(k == pl.num_programs(2) - 1)
    def _():
        # Bias add only once, in the last-K epilogue.
        o_ref[...] = (acc_ref[...] + b_ref[...]).astype(o_ref.dtype)


@functools.partial(jax.jit, static_argnames=())
def _linear_forward_impl(x_flat, w, b):
    """x_flat: [B, F] f32, w: [F, N] f32, b: [N] f32 -> logits [B, N] f32."""
    B, F = x_flat.shape
    Fw, N = w.shape
    assert Fw == F, (Fw, F)

    # ---- tile sizes & lane/sublane-dense padding -------------------------
    B_pad = _round_up(B, 8)                 # sublane multiple
    tm = min(B_pad, 128)
    B_pad = _round_up(B_pad, tm)

    N128 = _round_up(N, 128)                # lane-dense output / weight tiles
    tn = min(N128, 256)
    N_pad = _round_up(N128, tn)

    F128 = _round_up(F, 128)
    tk = min(F128, 2048)                    # deep K tiles: stream W efficiently
    F_pad = _round_up(F128, tk)

    # Zero padding is exact for the matmul; bf16 inputs, f32 accumulation.
    x_p = jnp.pad(x_flat.astype(jnp.bfloat16),
                  ((0, B_pad - B), (0, F_pad - F)))
    w_p = jnp.pad(w.astype(jnp.bfloat16),
                  ((0, F_pad - F), (0, N_pad - N)))
    b_p = jnp.pad(b.astype(jnp.float32), (0, N_pad - N)).reshape(1, N_pad)

    grid = (B_pad // tm, N_pad // tn, F_pad // tk)

    cost = pl.CostEstimate(
        flops=2 * B_pad * F_pad * N_pad,
        transcendentals=0,
        bytes_accessed=(B_pad * F_pad * 2      # x (bf16)
                        + F_pad * N_pad * 2    # w (bf16)
                        + N_pad * 4            # bias (f32)
                        + B_pad * N_pad * 4))  # logits (f32)

    out = pl.pallas_call(
        _linear_kernel,
        out_shape=jax.ShapeDtypeStruct((B_pad, N_pad), jnp.float32),
        grid=grid,
        in_specs=[
            pl.BlockSpec((tm, tk), lambda i, j, k: (i, k)),
            pl.BlockSpec((tk, tn), lambda i, j, k: (k, j)),
            pl.BlockSpec((1, tn), lambda i, j, k: (0, j)),
        ],
        out_specs=pl.BlockSpec((tm, tn), lambda i, j, k: (i, j)),
        scratch_shapes=[pltpu.VMEM((tm, tn), jnp.float32)],
        compiler_params=pltpu.CompilerParams(
            dimension_semantics=("parallel", "parallel", "arbitrary"),
            vmem_limit_bytes=48 * 1024 * 1024),  # fits v5e/v6e/v7x budgets
        cost_estimate=cost,
    )(x_p, w_p, b_p)

    return out[:B, :N]


def linear_forward(x_flat, w, b):
    return _linear_forward_impl(x_flat, w, b)


class BaseModelPallas:
    """Concrete realization of BaseModel: flatten -> linear -> logits."""

    def __init__(self, channels: int, height: int, width: int,
                 num_classes: int, key=None):
        if key is None:
            key = jax.random.PRNGKey(0)
        k_w, k_b = jax.random.split(key)
        F = channels * height * width
        bound = 1.0 / jnp.sqrt(F)
        self.w = jax.random.uniform(k_w, (F, num_classes), jnp.float32,
                                    minval=-bound, maxval=bound)
        self.b = jax.random.uniform(k_b, (num_classes,), jnp.float32,
                                    minval=-bound, maxval=bound)
        self.num_classes = num_classes

    def forward(self, x):
        # x: [B, C, H, W] (NCHW) -> logits [B, num_classes]
        B = x.shape[0]
        x_flat = x.reshape(B, -1).astype(jnp.float32)  # row-major C,H,W flatten
        return linear_forward(x_flat, self.w, self.b)

    __call__ = forward

    def predict(self, x):
        # argmax over class axis, like torch.max(outputs, 1)
        return jnp.argmax(self.forward(x), axis=1)

    def get_loss(self, batch):
        # Cross-entropy + accuracy, matching BaseModel.get_loss semantics.
        inputs, targets = batch
        logits = self.forward(inputs)
        logz = jax.nn.logsumexp(logits, axis=1)
        nll = logz - jnp.take_along_axis(
            logits, targets[:, None], axis=1)[:, 0]
        loss = jnp.mean(nll)
        predicted = jnp.argmax(logits, axis=1)
        accuracy = 100.0 * jnp.mean((predicted == targets).astype(jnp.float32))
        return {'loss': loss, 'accuracy': accuracy}

    def get_config(self):
        n_params = self.w.size + self.b.size
        return {'model_name': self.__class__.__name__,
                'num_parameters': int(n_params)}


if __name__ == "__main__":
    key = jax.random.PRNGKey(0)
    k_x, k_t, k_m = jax.random.split(key, 3)

    B, C, H, W = 2, 4, 16, 16
    NUM_CLASSES = 10

    x = jax.random.normal(k_x, (B, C, H, W), jnp.float32)
    targets = jax.random.randint(k_t, (B,), 0, NUM_CLASSES)

    model = BaseModelPallas(C, H, W, NUM_CLASSES, key=k_m)

    logits = model(x)
    logits = jax.block_until_ready(logits)
    assert logits.shape == (B, NUM_CLASSES)

    # reference in plain JAX, using the same bf16 input/weight cast with f32
    # accumulation (matches the kernel's numerics)
    x_flat = x.reshape(B, -1)
    ref = (x_flat.astype(jnp.bfloat16).astype(jnp.float32)
           @ model.w.astype(jnp.bfloat16).astype(jnp.float32)) + model.b
    assert jnp.allclose(logits, ref, atol=1e-3, rtol=1e-3), (
        float(jnp.max(jnp.abs(logits - ref))))

    # sanity check vs. full-f32 reference (loose — bf16 quantization of inputs)
    ref_f32 = x_flat @ model.w + model.b
    assert jnp.allclose(logits, ref_f32, atol=5e-2, rtol=5e-2)

    # exercise predict / get_loss / get_config glue paths
    preds = jax.block_until_ready(model.predict(x))
    assert preds.shape == (B,)
    metrics = model.get_loss((x, targets))
    jax.block_until_ready(metrics['loss'])
    _ = model.get_config()

    print("KERNEL_OK")
</pallas_src>

<mosaic_0001>
module attributes {stable_mosaic.version = 11 : i64} {
  func.func @_linear_kernel(%arg0: i32, %arg1: i32, %arg2: i32, %arg3: memref<8x1024xbf16, #tpu.memory_space<vmem>>, %arg4: memref<1024x128xbf16, #tpu.memory_space<vmem>>, %arg5: memref<1x128xf32, #tpu.memory_space<vmem>>, %arg6: memref<8x128xf32, #tpu.memory_space<vmem>>, %arg7: memref<8x128xf32, #tpu.memory_space<vmem>>) attributes {dimension_semantics = [#tpu.dimension_semantics<parallel>, #tpu.dimension_semantics<parallel>, #tpu.dimension_semantics<arbitrary>], iteration_bounds = array<i64: 1, 1, 1>, scalar_prefetch = 0 : i64, scratch_operands = 1 : i64, tpu.core_type = #tpu.core_type<tc>, window_params = [{transform_indices = @transform_0, window_bounds = array<i64: 8, 1024>}, {transform_indices = @transform_1, window_bounds = array<i64: 1024, 128>}, {transform_indices = @transform_2, window_bounds = array<i64: 1, 128>}, {transform_indices = @transform_3, window_bounds = array<i64: 8, 128>}]} {
    %c0_i32 = arith.constant 0 : i32
    %0 = arith.cmpi eq, %arg2, %c0_i32 : i32
    %1 = arith.extui %0 : i1 to i32
    %c0_i32_0 = arith.constant 0 : i32
    %2 = arith.cmpi ne, %1, %c0_i32_0 : i32
    scf.if %2 {
      %cst_10 = arith.constant 0.000000e+00 : f32
      %12 = vector.broadcast %cst_10 : f32 to vector<8x128xf32>
      %c0_11 = arith.constant 0 : index
      %c0_12 = arith.constant 0 : index
      %13 = vector.load %arg7[%c0_11, %c0_12] : memref<8x128xf32, #tpu.memory_space<vmem>>, vector<8x128xf32>
      tpu.vector_store %arg7[%c0_11, %c0_12], %12 {strides = array<i32>} : memref<8x128xf32, #tpu.memory_space<vmem>>, vector<8x128xf32>,
    } else {
    }
    %c0 = arith.constant 0 : index
    %c0_1 = arith.constant 0 : index
    %3 = vector.load %arg7[%c0, %c0_1] : memref<8x128xf32, #tpu.memory_space<vmem>>, vector<8x128xf32>
    %c0_2 = arith.constant 0 : index
    %c0_3 = arith.constant 0 : index
    %4 = vector.load %arg3[%c0_2, %c0_3] : memref<8x1024xbf16, #tpu.memory_space<vmem>>, vector<8x1024xbf16>
    %c0_4 = arith.constant 0 : index
    %c0_5 = arith.constant 0 : index
    %5 = vector.load %arg4[%c0_4, %c0_5] : memref<1024x128xbf16, #tpu.memory_space<vmem>>, vector<1024x128xbf16>
    %cst = arith.constant dense<0.000000e+00> : vector<8x128xf32>
    %6 = tpu.matmul %4, %5, %cst {dimension_numbers = #tpu.dot_dimension_numbers<[1], [0], [0], [1], [0, 0, 1, 1], [], []>} : vector<8x1024xbf16>, vector<1024x128xbf16>, vector<8x128xf32> -> vector<8x128xf32>
    %7 = arith.addf %3, %6 : vector<8x128xf32>
    %c0_6 = arith.constant 0 : index
    %c0_7 = arith.constant 0 : index
    %8 = vector.load %arg7[%c0_6, %c0_7] : memref<8x128xf32, #tpu.memory_space<vmem>>, vector<8x128xf32>
    tpu.vector_store %arg7[%c0_6, %c0_7], %7 {strides = array<i32>} : memref<8x128xf32, #tpu.memory_space<vmem>>, vector<8x128xf32>,
    %c0_i32_8 = arith.constant 0 : i32
    %9 = arith.cmpi eq, %arg2, %c0_i32_8 : i32
    %10 = arith.extui %9 : i1 to i32
    %c0_i32_9 = arith.constant 0 : i32
    %11 = arith.cmpi ne, %10, %c0_i32_9 : i32
    scf.if %11 {
      %c0_10 = arith.constant 0 : index
      %c0_11 = arith.constant 0 : index
      %12 = vector.load %arg7[%c0_10, %c0_11] : memref<8x128xf32, #tpu.memory_space<vmem>>, vector<8x128xf32>
      %c0_12 = arith.constant 0 : index
      %c0_13 = arith.constant 0 : index
      %13 = vector.load %arg5[%c0_12, %c0_13] : memref<1x128xf32, #tpu.memory_space<vmem>>, vector<1x128xf32>
      %14 = vector.broadcast %13 : vector<1x128xf32> to vector<8x128xf32>
      %15 = arith.addf %12, %14 : vector<8x128xf32>
      %c0_14 = arith.constant 0 : index
      %c0_15 = arith.constant 0 : index
      %16 = vector.load %arg6[%c0_14, %c0_15] : memref<8x128xf32, #tpu.memory_space<vmem>>, vector<8x128xf32>
      tpu.vector_store %arg6[%c0_14, %c0_15], %15 {strides = array<i32>} : memref<8x128xf32, #tpu.memory_space<vmem>>, vector<8x128xf32>,
    } else {
    }
    return
  }
  func.func @transform_0(%arg0: i32, %arg1: i32, %arg2: i32) -> (i32, i32) {
    %c0_i32 = arith.constant 0 : i32
    return %arg0, %arg2 : i32, i32
  }
  func.func @transform_1(%arg0: i32, %arg1: i32, %arg2: i32) -> (i32, i32) {
    %c0_i32 = arith.constant 0 : i32
    return %arg2, %arg1 : i32, i32
  }
  func.func @transform_2(%arg0: i32, %arg1: i32, %arg2: i32) -> (i32, i32) {
    %c0_i32 = arith.constant 0 : i32
    %c0_i32_0 = arith.constant 0 : i32
    return %c0_i32, %arg1 : i32, i32
  }
  func.func @transform_3(%arg0: i32, %arg1: i32, %arg2: i32) -> (i32, i32) {
    %c0_i32 = arith.constant 0 : i32
    return %arg0, %arg1 : i32, i32
  }
}

</mosaic_0001>

<llo_original>
// kernel: _linear_forward_impl.1
$region0: #{_linear_forward_impl.1}
  #allocation0 [shape = 'u32[]', space=smem, size = 0x4, offset = 0x4, fixed_abs, tag = 'smem constant byte address 0x4 - core index']
  #allocation1 [shape = 'u32[72,128]{1,0:T(1,128)}', space=vmem, size = 0x9000, scoped, tag = 'internal scratch']
  #allocation2 [shape = 'f32[8,128]{1,0:T(8,128)}', space=vmem, size = 0x1000, scoped, tag = 'scratch operand']
  %s0 = inlined_call_operand.vmem [shape: bf16[8,1024], index: 0, kind: input, shape index: {}]
  %s1 = inlined_call_operand.vmem [shape: bf16[1024,128], index: 1, kind: input, shape index: {}]
  %s2 = inlined_call_operand.vmem [shape: f32[1,128], index: 2, kind: input, shape index: {}]
  %s3 = inlined_call_operand.vmem [shape: f32[8,128], index: 3, kind: output, shape index: {}]
  %s4 = sld [smem:[#allocation0]]
  $region30: #{_linear_forward_impl.1} parent=0
    _
  %s6 = ssub.s32 1, %s4
  %s7 = scalar_select 0, %s6, %s4
  // Predicated region
  $region2: #{_linear_forward_impl.1} parent=0 // pred_check
    _
  $region3: #{_linear_forward_impl.1} parent=0 // pred_check_branch
    %9 = sbr.rel (0) target = $region5
  $region4: #{_linear_forward_impl.1} parent=0 // pred_region
    _
  $region5: #{_linear_forward_impl.1} parent=0 // pred_fallthru
    _
  // Predicated region
  $region6: #{_linear_forward_impl.1} parent=0 // pred_check
    _
  $region7: #{_linear_forward_impl.1} parent=0 // pred_check_branch
    %11 = sbr.rel (0) target = $region9
  $region8: #{_linear_forward_impl.1} parent=0 // pred_region
    _
  $region9: #{_linear_forward_impl.1} parent=0 // pred_fallthru
    _
  // Predicated region
  $region10: #{_linear_forward_impl.1} parent=0 // pred_check
    _
  $region11: #{_linear_forward_impl.1} parent=0 // pred_check_branch
    %13 = sbr.rel (0) target = $region13
  $region12: #{_linear_forward_impl.1} parent=0 // pred_region
    _
  $region13: #{_linear_forward_impl.1} parent=0 // pred_fallthru
    _
  %p14 = scmp.eq.s32.totalorder 0, 0
  // Predicated region
  $region14: #{_linear_forward_impl.1} parent=0 // pred_check
    %p15 = pneg %p14
  $region15: #{_linear_forward_impl.1} parent=0 // pred_check_branch
    %17 = sbr.rel (%p15) target = $region17
  $region16: #{_linear_forward_impl.1} parent=0 // pred_region
    %18 = vst [vmem:[#allocation2] sm:$0xff] 0.0
  $region17: #{_linear_forward_impl.1} parent=0 // pred_fallthru
    _
  %v19 = vld [vmem:[#allocation2] sm:$0xff]
  %v20 = vld [vmem:[%s0] sm:$0xff]
  %v21 = vld [vmem:[%s0 + $0x8] sm:$0xff]
  %v22 = vld [vmem:[%s0 + $0x10] sm:$0xff]
  %v23 = vld [vmem:[%s0 + $0x18] sm:$0xff]
  %v24 = vld [vmem:[%s1] sm:$0xf]
  %v25 = vld [vmem:[%s1 + $0x4] sm:$0xf]
  %v26 = vld [vmem:[%s1 + $0x8] sm:$0xf]
  %v27 = vld [vmem:[%s1 + $0xc] sm:$0xf]
  %v28 = vld [vmem:[%s1 + $0x10] sm:$0xf]
  %v29 = vld [vmem:[%s1 + $0x14] sm:$0xf]
  %v30 = vld [vmem:[%s1 + $0x18] sm:$0xf]
  %v31 = vld [vmem:[%s1 + $0x1c] sm:$0xf]
  %v32 = vld [vmem:[%s1 + $0x20] sm:$0xf]
  %v33 = vld [vmem:[%s1 + $0x24] sm:$0xf]
  %v34 = vld [vmem:[%s1 + $0x28] sm:$0xf]
  %v35 = vld [vmem:[%s1 + $0x2c] sm:$0xf]
  %v36 = vld [vmem:[%s1 + $0x30] sm:$0xf]
  %v37 = vld [vmem:[%s1 + $0x34] sm:$0xf]
  %v38 = vld [vmem:[%s1 + $0x38] sm:$0xf]
  %v39 = vld [vmem:[%s1 + $0x3c] sm:$0xf]
  %v40 = vld [vmem:[%s1 + $0x40] sm:$0xf]
  %v41 = vld [vmem:[%s1 + $0x44] sm:$0xf]
  %v42 = vld [vmem:[%s1 + $0x48] sm:$0xf]
  %v43 = vld [vmem:[%s1 + $0x4c] sm:$0xf]
  %v44 = vld [vmem:[%s1 + $0x50] sm:$0xf]
  %v45 = vld [vmem:[%s1 + $0x54] sm:$0xf]
  %v46 = vld [vmem:[%s1 + $0x58] sm:$0xf]
  %v47 = vld [vmem:[%s1 + $0x5c] sm:$0xf]
  %v48 = vld [vmem:[%s1 + $0x60] sm:$0xf]
  %v49 = vld [vmem:[%s1 + $0x64] sm:$0xf]
  %v50 = vld [vmem:[%s1 + $0x68] sm:$0xf]
  %v51 = vld [vmem:[%s1 + $0x6c] sm:$0xf]
  %v52 = vld [vmem:[%s1 + $0x70] sm:$0xf]
  %v53 = vld [vmem:[%s1 + $0x74] sm:$0xf]
  %v54 = vld [vmem:[%s1 + $0x78] sm:$0xf]
  %v55 = vld [vmem:[%s1 + $0x7c] sm:$0xf]
  %v56 = vld [vmem:[%s1 + $0x80] sm:$0xf]
  %v57 = vld [vmem:[%s1 + $0x84] sm:$0xf]
  %v58 = vld [vmem:[%s1 + $0x88] sm:$0xf]
  %v59 = vld [vmem:[%s1 + $0x8c] sm:$0xf]
  %v60 = vld [vmem:[%s1 + $0x90] sm:$0xf]
  %v61 = vld [vmem:[%s1 + $0x94] sm:$0xf]
  %v62 = vld [vmem:[%s1 + $0x98] sm:$0xf]
  %v63 = vld [vmem:[%s1 + $0x9c] sm:$0xf]
  %v64 = vld [vmem:[%s1 + $0xa0] sm:$0xf]
  %v65 = vld [vmem:[%s1 + $0xa4] sm:$0xf]
  %v66 = vld [vmem:[%s1 + $0xa8] sm:$0xf]
  %v67 = vld [vmem:[%s1 + $0xac] sm:$0xf]
  %v68 = vld [vmem:[%s1 + $0xb0] sm:$0xf]
  %v69 = vld [vmem:[%s1 + $0xb4] sm:$0xf]
  %v70 = vld [vmem:[%s1 + $0xb8] sm:$0xf]
  %v71 = vld [vmem:[%s1 + $0xbc] sm:$0xf]
  %v72 = vld [vmem:[%s1 + $0xc0] sm:$0xf]
  %v73 = vld [vmem:[%s1 + $0xc4] sm:$0xf]
  %v74 = vld [vmem:[%s1 + $0xc8] sm:$0xf]
  %v75 = vld [vmem:[%s1 + $0xcc] sm:$0xf]
  %v76 = vld [vmem:[%s1 + $0xd0] sm:$0xf]
  %v77 = vld [vmem:[%s1 + $0xd4] sm:$0xf]
  %v78 = vld [vmem:[%s1 + $0xd8] sm:$0xf]
  %v79 = vld [vmem:[%s1 + $0xdc] sm:$0xf]
  %v80 = vld [vmem:[%s1 + $0xe0] sm:$0xf]
  %v81 = vld [vmem:[%s1 + $0xe4] sm:$0xf]
  %v82 = vld [vmem:[%s1 + $0xe8] sm:$0xf]
  %v83 = vld [vmem:[%s1 + $0xec] sm:$0xf]
  %v84 = vld [vmem:[%s1 + $0xf0] sm:$0xf]
  %v85 = vld [vmem:[%s1 + $0xf4] sm:$0xf]
  %v86 = vld [vmem:[%s1 + $0xf8] sm:$0xf]
  %v87 = vld [vmem:[%s1 + $0xfc] sm:$0xf]
  %v88 = vld [vmem:[%s1 + $0x100] sm:$0xf]
  %v89 = vld [vmem:[%s1 + $0x104] sm:$0xf]
  %v90 = vld [vmem:[%s1 + $0x108] sm:$0xf]
  %v91 = vld [vmem:[%s1 + $0x10c] sm:$0xf]
  %v92 = vld [vmem:[%s1 + $0x110] sm:$0xf]
  %v93 = vld [vmem:[%s1 + $0x114] sm:$0xf]
  %v94 = vld [vmem:[%s1 + $0x118] sm:$0xf]
  %v95 = vld [vmem:[%s1 + $0x11c] sm:$0xf]
  %v96 = vld [vmem:[%s1 + $0x120] sm:$0xf]
  %v97 = vld [vmem:[%s1 + $0x124] sm:$0xf]
  %v98 = vld [vmem:[%s1 + $0x128] sm:$0xf]
  %v99 = vld [vmem:[%s1 + $0x12c] sm:$0xf]
  %v100 = vld [vmem:[%s1 + $0x130] sm:$0xf]
  %v101 = vld [vmem:[%s1 + $0x134] sm:$0xf]
  %v102 = vld [vmem:[%s1 + $0x138] sm:$0xf]
  %v103 = vld [vmem:[%s1 + $0x13c] sm:$0xf]
  %v104 = vld [vmem:[%s1 + $0x140] sm:$0xf]
  %v105 = vld [vmem:[%s1 + $0x144] sm:$0xf]
  %v106 = vld [vmem:[%s1 + $0x148] sm:$0xf]
  %v107 = vld [vmem:[%s1 + $0x14c] sm:$0xf]
  %v108 = vld [vmem:[%s1 + $0x150] sm:$0xf]
  %v109 = vld [vmem:[%s1 + $0x154] sm:$0xf]
  %v110 = vld [vmem:[%s1 + $0x158] sm:$0xf]
  %v111 = vld [vmem:[%s1 + $0x15c] sm:$0xf]
  %v112 = vld [vmem:[%s1 + $0x160] sm:$0xf]
  %v113 = vld [vmem:[%s1 + $0x164] sm:$0xf]
  %v114 = vld [vmem:[%s1 + $0x168] sm:$0xf]
  %v115 = vld [vmem:[%s1 + $0x16c] sm:$0xf]
  %v116 = vld [vmem:[%s1 + $0x170] sm:$0xf]
  %v117 = vld [vmem:[%s1 + $0x174] sm:$0xf]
  %v118 = vld [vmem:[%s1 + $0x178] sm:$0xf]
  %v119 = vld [vmem:[%s1 + $0x17c] sm:$0xf]
  %v120 = vld [vmem:[%s1 + $0x180] sm:$0xf]
  %v121 = vld [vmem:[%s1 + $0x184] sm:$0xf]
  %v122 = vld [vmem:[%s1 + $0x188] sm:$0xf]
  %v123 = vld [vmem:[%s1 + $0x18c] sm:$0xf]
  %v124 = vld [vmem:[%s1 + $0x190] sm:$0xf]
  %v125 = vld [vmem:[%s1 + $0x194] sm:$0xf]
  %v126 = vld [vmem:[%s1 + $0x198] sm:$0xf]
  %v127 = vld [vmem:[%s1 + $0x19c] sm:$0xf]
  %v128 = vld [vmem:[%s1 + $0x1a0] sm:$0xf]
  %v129 = vld [vmem:[%s1 + $0x1a4] sm:$0xf]
  %v130 = vld [vmem:[%s1 + $0x1a8] sm:$0xf]
  %v131 = vld [vmem:[%s1 + $0x1ac] sm:$0xf]
  %v132 = vld [vmem:[%s1 + $0x1b0] sm:$0xf]
  %v133 = vld [vmem:[%s1 + $0x1b4] sm:$0xf]
  %v134 = vld [vmem:[%s1 + $0x1b8] sm:$0xf]
  %v135 = vld [vmem:[%s1 + $0x1bc] sm:$0xf]
  %v136 = vld [vmem:[%s1 + $0x1c0] sm:$0xf]
  %v137 = vld [vmem:[%s1 + $0x1c4] sm:$0xf]
  %v138 = vld [vmem:[%s1 + $0x1c8] sm:$0xf]
  %v139 = vld [vmem:[%s1 + $0x1cc] sm:$0xf]
  %v140 = vld [vmem:[%s1 + $0x1d0] sm:$0xf]
  %v141 = vld [vmem:[%s1 + $0x1d4] sm:$0xf]
  %v142 = vld [vmem:[%s1 + $0x1d8] sm:$0xf]
  %v143 = vld [vmem:[%s1 + $0x1dc] sm:$0xf]
  %v144 = vld [vmem:[%s1 + $0x1e0] sm:$0xf]
  %v145 = vld [vmem:[%s1 + $0x1e4] sm:$0xf]
  %v146 = vld [vmem:[%s1 + $0x1e8] sm:$0xf]
  %v147 = vld [vmem:[%s1 + $0x1ec] sm:$0xf]
  %v148 = vld [vmem:[%s1 + $0x1f0] sm:$0xf]
  %v149 = vld [vmem:[%s1 + $0x1f4] sm:$0xf]
  %v150 = vld [vmem:[%s1 + $0x1f8] sm:$0xf]
  %v151 = vld [vmem:[%s1 + $0x1fc] sm:$0xf]
  %v156 = vunpack.c.l.b16 %v20
  %v157 = vunpack.c.h.b16 %v20
  %v158 = vunpack.c.l.b16 %v21
  %v159 = vunpack.c.h.b16 %v21
  %v160 = vunpack.c.l.b16 %v22
  %v161 = vunpack.c.h.b16 %v22
  %v162 = vunpack.c.l.b16 %v23
  %v163 = vunpack.c.h.b16 %v23
  %v164 = vpack.c.b16 %v156, %v156
  %v165 = vpack.c.b16 %v157, %v157
  %v166 = vpack.c.b16 %v158, %v158
  %v167 = vpack.c.b16 %v159, %v159
  %v168 = vpack.c.b16 %v160, %v160
  %v169 = vpack.c.b16 %v161, %v161
  %v170 = vpack.c.b16 %v162, %v162
  %v171 = vpack.c.b16 %v163, %v163
  %v308 = vunpack.c.l.b16 %v24
  %v309 = vunpack.c.l.b16 %v25
  %v310 = vunpack.c.l.b16 %v26
  %v311 = vunpack.c.l.b16 %v27
  %v312 = vunpack.c.l.b16 %v28
  %v313 = vunpack.c.l.b16 %v29
  %v314 = vunpack.c.l.b16 %v30
  %v315 = vunpack.c.l.b16 %v31
  %v316 = vunpack.c.l.b16 %v32
  %v317 = vunpack.c.l.b16 %v33
  %v318 = vunpack.c.l.b16 %v34
  %v319 = vunpack.c.l.b16 %v35
  %v320 = vunpack.c.l.b16 %v36
  %v321 = vunpack.c.l.b16 %v37
  %v322 = vunpack.c.l.b16 %v38
  %v323 = vunpack.c.l.b16 %v39
  %v324 = vunpack.c.l.b16 %v40
  %v325 = vunpack.c.l.b16 %v41
  %v326 = vunpack.c.l.b16 %v42
  %v327 = vunpack.c.l.b16 %v43
  %v328 = vunpack.c.l.b16 %v44
  %v329 = vunpack.c.l.b16 %v45
  %v330 = vunpack.c.l.b16 %v46
  %v331 = vunpack.c.l.b16 %v47
  %v332 = vunpack.c.l.b16 %v48
  %v333 = vunpack.c.l.b16 %v49
  %v334 = vunpack.c.l.b16 %v50
  %v335 = vunpack.c.l.b16 %v51
  %v336 = vunpack.c.l.b16 %v52
  %v337 = vunpack.c.l.b16 %v53
  %v338 = vunpack.c.l.b16 %v54
  %v339 = vunpack.c.l.b16 %v55
  %v340 = vunpack.c.l.b16 %v56
  %v341 = vunpack.c.l.b16 %v57
  %v342 = vunpack.c.l.b16 %v58
  %v343 = vunpack.c.l.b16 %v59
  %v344 = vunpack.c.l.b16 %v60
  %v345 = vunpack.c.l.b16 %v61
  %v346 = vunpack.c.l.b16 %v62
  %v347 = vunpack.c.l.b16 %v63
  %v348 = vunpack.c.l.b16 %v64
  %v349 = vunpack.c.l.b16 %v65
  %v350 = vunpack.c.l.b16 %v66
  %v351 = vunpack.c.l.b16 %v67
  %v352 = vunpack.c.l.b16 %v68
  %v353 = vunpack.c.l.b16 %v69
  %v354 = vunpack.c.l.b16 %v70
  %v355 = vunpack.c.l.b16 %v71
  %v356 = vunpack.c.l.b16 %v72
  %v357 = vunpack.c.l.b16 %v73
  %v358 = vunpack.c.l.b16 %v74
  %v359 = vunpack.c.l.b16 %v75
  %v360 = vunpack.c.l.b16 %v76
  %v361 = vunpack.c.l.b16 %v77
  %v362 = vunpack.c.l.b16 %v78
  %v363 = vunpack.c.l.b16 %v79
  %v364 = vunpack.c.l.b16 %v80
  %v365 = vunpack.c.l.b16 %v81
  %v366 = vunpack.c.l.b16 %v82
  %v367 = vunpack.c.l.b16 %v83
  %v368 = vunpack.c.l.b16 %v84
  %v369 = vunpack.c.l.b16 %v85
  %v370 = vunpack.c.l.b16 %v86
  %v371 = vunpack.c.l.b16 %v87
  %v372 = vunpack.c.l.b16 %v88
  %v373 = vunpack.c.l.b16 %v89
  %v374 = vunpack.c.l.b16 %v90
  %v375 = vunpack.c.l.b16 %v91
  %v376 = vunpack.c.l.b16 %v92
  %v377 = vunpack.c.l.b16 %v93
  %v378 = vunpack.c.l.b16 %v94
  %v379 = vunpack.c.l.b16 %v95
  %v380 = vunpack.c.l.b16 %v96
  %v381 = vunpack.c.l.b16 %v97
  %v382 = vunpack.c.l.b16 %v98
  %v383 = vunpack.c.l.b16 %v99
  %v384 = vunpack.c.l.b16 %v100
  %v385 = vunpack.c.l.b16 %v101
  %v386 = vunpack.c.l.b16 %v102
  %v387 = vunpack.c.l.b16 %v103
  %v388 = vunpack.c.l.b16 %v104
  %v389 = vunpack.c.l.b16 %v105
  %v390 = vunpack.c.l.b16 %v106
  %v391 = vunpack.c.l.b16 %v107
  %v392 = vunpack.c.l.b16 %v108
  %v393 = vunpack.c.l.b16 %v109
  %v394 = vunpack.c.l.b16 %v110
  %v395 = vunpack.c.l.b16 %v111
  %v396 = vunpack.c.l.b16 %v112
  %v397 = vunpack.c.l.b16 %v113
  %v398 = vunpack.c.l.b16 %v114
  %v399 = vunpack.c.l.b16 %v115
  %v400 = vunpack.c.l.b16 %v116
  %v401 = vunpack.c.l.b16 %v117
  %v402 = vunpack.c.l.b16 %v118
  %v403 = vunpack.c.l.b16 %v119
  %v404 = vunpack.c.l.b16 %v120
  %v405 = vunpack.c.l.b16 %v121
  %v406 = vunpack.c.l.b16 %v122
  %v407 = vunpack.c.l.b16 %v123
  %v408 = vunpack.c.l.b16 %v124
  %v409 = vunpack.c.l.b16 %v125
  %v410 = vunpack.c.l.b16 %v126
  %v411 = vunpack.c.l.b16 %v127
  %v412 = vunpack.c.l.b16 %v128
  %v413 = vunpack.c.l.b16 %v129
  %v414 = vunpack.c.l.b16 %v130
  %v415 = vunpack.c.l.b16 %v131
  %v416 = vunpack.c.l.b16 %v132
  %v417 = vunpack.c.l.b16 %v133
  %v418 = vunpack.c.l.b16 %v134
  %v419 = vunpack.c.l.b16 %v135
  %v420 = vunpack.c.l.b16 %v136
  %v421 = vunpack.c.l.b16 %v137
  %v422 = vunpack.c.l.b16 %v138
  %v423 = vunpack.c.l.b16 %v139
  %v424 = vunpack.c.l.b16 %v140
  %v425 = vunpack.c.l.b16 %v141
  %v426 = vunpack.c.l.b16 %v142
  %v427 = vunpack.c.l.b16 %v143
  %v428 = vunpack.c.l.b16 %v144
  %v429 = vunpack.c.l.b16 %v145
  %v430 = vunpack.c.l.b16 %v146
  %v431 = vunpack.c.l.b16 %v147
  %v432 = vunpack.c.l.b16 %v148
  %v433 = vunpack.c.l.b16 %v149
  %v434 = vunpack.c.l.b16 %v150
  %v435 = vunpack.c.l.b16 %v151
  %v436 = vpack.c.b16 %v309, %v308
  %v437 = vpack.c.b16 %v311, %v310
  %v438 = vpack.c.b16 %v313, %v312
  %v439 = vpack.c.b16 %v315, %v314
  %v440 = vpack.c.b16 %v317, %v316
  %v441 = vpack.c.b16 %v319, %v318
  %v442 = vpack.c.b16 %v321, %v320
  %v443 = vpack.c.b16 %v323, %v322
  %v444 = vpack.c.b16 %v325, %v324
  %v445 = vpack.c.b16 %v327, %v326
  %v446 = vpack.c.b16 %v329, %v328
  %v447 = vpack.c.b16 %v331, %v330
  %v448 = vpack.c.b16 %v333, %v332
  %v449 = vpack.c.b16 %v335, %v334
  %v450 = vpack.c.b16 %v337, %v336
  %v451 = vpack.c.b16 %v339, %v338
  %v452 = vpack.c.b16 %v341, %v340
  %v453 = vpack.c.b16 %v343, %v342
  %v454 = vpack.c.b16 %v345, %v344
  %v455 = vpack.c.b16 %v347, %v346
  %v456 = vpack.c.b16 %v349, %v348
  %v457 = vpack.c.b16 %v351, %v350
  %v458 = vpack.c.b16 %v353, %v352
  %v459 = vpack.c.b16 %v355, %v354
  %v460 = vpack.c.b16 %v357, %v356
  %v461 = vpack.c.b16 %v359, %v358
  %v462 = vpack.c.b16 %v361, %v360
  %v463 = vpack.c.b16 %v363, %v362
  %v464 = vpack.c.b16 %v365, %v364
  %v465 = vpack.c.b16 %v367, %v366
  %v466 = vpack.c.b16 %v369, %v368
  %v467 = vpack.c.b16 %v371, %v370
  %v468 = vpack.c.b16 %v373, %v372
  %v469 = vpack.c.b16 %v375, %v374
  %v470 = vpack.c.b16 %v377, %v376
  %v471 = vpack.c.b16 %v379, %v378
  %v472 = vpack.c.b16 %v381, %v380
  %v473 = vpack.c.b16 %v383, %v382
  %v474 = vpack.c.b16 %v385, %v384
  %v475 = vpack.c.b16 %v387, %v386
  %v476 = vpack.c.b16 %v389, %v388
  %v477 = vpack.c.b16 %v391, %v390
  %v478 = vpack.c.b16 %v393, %v392
  %v479 = vpack.c.b16 %v395, %v394
  %v480 = vpack.c.b16 %v397, %v396
  %v481 = vpack.c.b16 %v399, %v398
  %v482 = vpack.c.b16 %v401, %v400
  %v483 = vpack.c.b16 %v403, %v402
  %v484 = vpack.c.b16 %v405, %v404
  %v485 = vpack.c.b16 %v407, %v406
  %v486 = vpack.c.b16 %v409, %v408
  %v487 = vpack.c.b16 %v411, %v410
  %v488 = vpack.c.b16 %v413, %v412
  %v489 = vpack.c.b16 %v415, %v414
  %v490 = vpack.c.b16 %v417, %v416
  %v491 = vpack.c.b16 %v419, %v418
  %v492 = vpack.c.b16 %v421, %v420
  %v493 = vpack.c.b16 %v423, %v422
  %v494 = vpack.c.b16 %v425, %v424
  %v495 = vpack.c.b16 %v427, %v426
  %v496 = vpack.c.b16 %v429, %v428
  %v497 = vpack.c.b16 %v431, %v430
  %v498 = vpack.c.b16 %v433, %v432
  %v499 = vpack.c.b16 %v435, %v434
  %564 = vmatpush.bf16.msra.mxu0 %v443
  %565 = vmatpush.bf16.msra.mxu0 %v442
  %566 = vmatpush.bf16.msra.mxu0 %v441
  %567 = vmatpush.bf16.msra.mxu0 %v440
  %568 = vmatpush.bf16.msra.mxu0 %v439
  %569 = vmatpush.bf16.msra.mxu0 %v438
  %570 = vmatpush.bf16.msra.mxu0 %v437
  %571 = vmatpush.bf16.msra.mxu0 %v436
  %572 = vmatmul.bf16.gmra.mxu0 %v164
  %v573 = vpop.f32.mrf.mxu0
  %v574 = vadd.f32 0.0, %v573
  %v575 = vpop.f32.mrf.mxu0
  %576 = vdwg.mxu0
  %577 = vmatpush.bf16.msra.mxu0 %v451
  %578 = vmatpush.bf16.msra.mxu0 %v450
  %579 = vmatpush.bf16.msra.mxu0 %v449
  %580 = vmatpush.bf16.msra.mxu0 %v448
  %581 = vmatpush.bf16.msra.mxu0 %v447
  %582 = vmatpush.bf16.msra.mxu0 %v446
  %583 = vmatpush.bf16.msra.mxu0 %v445
  %584 = vmatpush.bf16.msra.mxu0 %v444
  %585 = vmatmul.bf16.gmra.mxu0 %v165
  %v586 = vpop.f32.mrf.mxu0
  %v587 = vadd.f32 %v574, %v586
  %v588 = vpop.f32.mrf.mxu0
  %589 = vdwg.mxu0
  %590 = vmatpush.bf16.msra.mxu0 %v459
  %591 = vmatpush.bf16.msra.mxu0 %v458
  %592 = vmatpush.bf16.msra.mxu0 %v457
  %593 = vmatpush.bf16.msra.mxu0 %v456
  %594 = vmatpush.bf16.msra.mxu0 %v455
  %595 = vmatpush.bf16.msra.mxu0 %v454
  %596 = vmatpush.bf16.msra.mxu0 %v453
  %597 = vmatpush.bf16.msra.mxu0 %v452
  %598 = vmatmul.bf16.gmra.mxu0 %v166
  %v599 = vpop.f32.mrf.mxu0
  %v600 = vadd.f32 %v587, %v599
  %v601 = vpop.f32.mrf.mxu0
  %602 = vdwg.mxu0
  %603 = vmatpush.bf16.msra.mxu0 %v467
  %604 = vmatpush.bf16.msra.mxu0 %v466
  %605 = vmatpush.bf16.msra.mxu0 %v465
  %606 = vmatpush.bf16.msra.mxu0 %v464
  %607 = vmatpush.bf16.msra.mxu0 %v463
  %608 = vmatpush.bf16.msra.mxu0 %v462
  %609 = vmatpush.bf16.msra.mxu0 %v461
  %610 = vmatpush.bf16.msra.mxu0 %v460
  %611 = vmatmul.bf16.gmra.mxu0 %v167
  %v612 = vpop.f32.mrf.mxu0
  %v613 = vadd.f32 %v600, %v612
  %v614 = vpop.f32.mrf.mxu0
  %615 = vdwg.mxu0
  %616 = vmatpush.bf16.msra.mxu0 %v475
  %617 = vmatpush.bf16.msra.mxu0 %v474
  %618 = vmatpush.bf16.msra.mxu0 %v473
  %619 = vmatpush.bf16.msra.mxu0 %v472
  %620 = vmatpush.bf16.msra.mxu0 %v471
  %621 = vmatpush.bf16.msra.mxu0 %v470
  %622 = vmatpush.bf16.msra.mxu0 %v469
  %623 = vmatpush.bf16.msra.mxu0 %v468
  %624 = vmatmul.bf16.gmra.mxu0 %v168
  %v625 = vpop.f32.mrf.mxu0
  %v626 = vadd.f32 %v613, %v625
  %v627 = vpop.f32.mrf.mxu0
  %628 = vdwg.mxu0
  %629 = vmatpush.bf16.msra.mxu0 %v483
  %630 = vmatpush.bf16.msra.mxu0 %v482
  %631 = vmatpush.bf16.msra.mxu0 %v481
  %632 = vmatpush.bf16.msra.mxu0 %v480
  %633 = vmatpush.bf16.msra.mxu0 %v479
  %634 = vmatpush.bf16.msra.mxu0 %v478
  %635 = vmatpush.bf16.msra.mxu0 %v477
  %636 = vmatpush.bf16.msra.mxu0 %v476
  %637 = vmatmul.bf16.gmra.mxu0 %v169
  %v638 = vpop.f32.mrf.mxu0
  %v639 = vadd.f32 %v626, %v638
  %v640 = vpop.f32.mrf.mxu0
  %641 = vdwg.mxu0
  %642 = vmatpush.bf16.msra.mxu0 %v491
  %643 = vmatpush.bf16.msra.mxu0 %v490
  %644 = vmatpush.bf16.msra.mxu0 %v489
  %645 = vmatpush.bf16.msra.mxu0 %v488
  %646 = vmatpush.bf16.msra.mxu0 %v487
  %647 = vmatpush.bf16.msra.mxu0 %v486
  %648 = vmatpush.bf16.msra.mxu0 %v485
  %649 = vmatpush.bf16.msra.mxu0 %v484
  %650 = vmatmul.bf16.gmra.mxu0 %v170
  %v651 = vpop.f32.mrf.mxu0
  %v652 = vadd.f32 %v639, %v651
  %v653 = vpop.f32.mrf.mxu0
  %654 = vdwg.mxu0
  %655 = vmatpush.bf16.msra.mxu0 %v499
  %656 = vmatpush.bf16.msra.mxu0 %v498
  %657 = vmatpush.bf16.msra.mxu0 %v497
  %658 = vmatpush.bf16.msra.mxu0 %v496
  %659 = vmatpush.bf16.msra.mxu0 %v495
  %660 = vmatpush.bf16.msra.mxu0 %v494
  %661 = vmatpush.bf16.msra.mxu0 %v493
  %662 = vmatpush.bf16.msra.mxu0 %v492
  %663 = vmatmul.bf16.gmra.mxu0 %v171
  %v664 = vpop.f32.mrf.mxu0
  %v665 = vadd.f32 %v652, %v664
  %v666 = vpop.f32.mrf.mxu0
  %667 = vdwg.mxu0
  %v668 = vadd.f32 %v19, %v665
  %669 = vst [vmem:[#allocation2] sm:$0xff] %v668
  // Predicated region
  $region18: #{_linear_forward_impl.1} parent=0 // pred_check
    %p670 = pneg %p14
  $region19: #{_linear_forward_impl.1} parent=0 // pred_check_branch
    %672 = sbr.rel (%p670) target = $region21
  $region20: #{_linear_forward_impl.1} parent=0 // pred_region
    %v673 = vld [vmem:[#allocation2] sm:$0xff]
    %v674 = vld [vmem:[%s2] sm:$0x1]
    %v676 = vperm.slane %v674, 0
    %v678 = vadd.f32 %v673, %v676
    %679 = vst [vmem:[%s3] sm:$0xff] %v678
  $region21: #{_linear_forward_impl.1} parent=0 // pred_fallthru
    _
  // Predicated region
  $region22: #{_linear_forward_impl.1} parent=0 // pred_check
    _
  $region23: #{_linear_forward_impl.1} parent=0 // pred_check_branch
    %681 = sbr.rel (0) target = $region25
  $region24: #{_linear_forward_impl.1} parent=0 // pred_region
    _
  $region25: #{_linear_forward_impl.1} parent=0 // pred_fallthru
    _
  // Predicated region
  $region26: #{_linear_forward_impl.1} parent=0 // pred_check
    _
  $region27: #{_linear_forward_impl.1} parent=0 // pred_check_branch
    %683 = sbr.rel (0) target = $region29
  $region28: #{_linear_forward_impl.1} parent=0 // pred_region
    _
  $region29: #{_linear_forward_impl.1} parent=0 // pred_fallthru
    _

</llo_original>
